<compile_context>
chip_gen: v6e
topology: v6e:2x2x1
jax: 0.10.0
libtpu: 0.0.40
codegen_flags: <defaults>
</compile_context>

<pallas_src>
import jax
import jax.numpy as jnp
from jax.experimental import pallas as pl
from jax.experimental.pallas import tpu as pltpu

HIDDEN = 100   # logical hidden width of the PyTorch module
HPAD = 128     # lane-dense padded hidden width


def _round_up(x, m):
    return -(-x // m) * m


def gcn_kernel(x_ref,
               w1_ref, b1_ref,
               w234_ref, b234_ref,
               w5_ref, b5_ref,
               o_ref):
    # Layer 1: Linear(dim_in_pad, 128) + ReLU. bf16 operands -> f32 accumulate.
    h = jnp.dot(x_ref[...].astype(jnp.bfloat16), w1_ref[...],
                preferred_element_type=jnp.float32)
    h = jnp.maximum(h + b1_ref[...], 0.0)

    # Hidden layers 2..4, statically unrolled; weights stacked in one ref so the
    # pipeline tracks 7 inputs instead of 11 (padded rows/cols are zero, so the
    # zero-padded activation columns stay exactly zero through every layer).
    for l in range(3):
        h = jnp.dot(h.astype(jnp.bfloat16), w234_ref[l],
                    preferred_element_type=jnp.float32)
        h = jnp.maximum(h + b234_ref[l], 0.0)

    # Output layer + sigmoid.  Exact tanh form: one EUP op per element,
    # epilogue stays off the vector-ALU and avoids the approx-reciprocal error.
    logits = jnp.dot(h.astype(jnp.bfloat16), w5_ref[...],
                     preferred_element_type=jnp.float32) + b5_ref[...]
    o_ref[...] = 0.5 * jnp.tanh(0.5 * logits) + 0.5


def pad_params(params, dim_in, dim_out):
    """Zero-pad logical params to lane-dense shapes; weights -> bf16 (MXU peak
    path), biases stay f32 (negligible bytes, exact bias-add)."""
    w1, b1, w2, b2, w3, b3, w4, b4, w5, b5 = params
    din_pad = _round_up(dim_in, 128)
    opad = _round_up(dim_out, 128)

    def padw(w, rows, cols):
        p = jnp.pad(w, ((0, rows - w.shape[0]), (0, cols - w.shape[1])))
        return p.astype(jnp.bfloat16)

    def padb(b, cols):
        return jnp.pad(b, ((0, 0), (0, cols - b.shape[1])))  # keep f32

    w234 = jnp.stack([padw(w2, HPAD, HPAD),
                      padw(w3, HPAD, HPAD),
                      padw(w4, HPAD, HPAD)])                 # (3, 128, 128) bf16
    b234 = jnp.stack([padb(b2, HPAD), padb(b3, HPAD), padb(b4, HPAD)])  # (3,1,128)

    return (padw(w1, din_pad, HPAD), padb(b1, HPAD),
            w234, b234,
            padw(w5, HPAD, opad), padb(b5, opad))


def gcn_forward(x, params, dim_out, tile_m=1024):
    """x: [batch, dim_in] f32. params: flat tuple of logical (unpadded) params."""
    batch, dim_in = x.shape
    din_pad = _round_up(dim_in, 128)
    w1p, b1p, w234, b234, w5p, b5p = pad_params(params, dim_in, dim_out)
    padded = (w1p, b1p, w234, b234, w5p, b5p)
    opad = w5p.shape[1]

    # Lane-dense input: pad x columns together with w1 rows (both zero -> no-op math).
    if din_pad != dim_in:
        x = jnp.pad(x, ((0, 0), (0, din_pad - dim_in)))

    # Row tile: big (default 1024) to amortize per-step overhead, rounded to the
    # 8-sublane granule for tiny batches; when batch allows, cap at half the
    # padded batch so the grid has >=2 steps (lets v7x shard across its 2 TCs).
    rows8 = _round_up(batch, 8)
    tm = min(tile_m, rows8)
    if rows8 >= 16:
        tm = min(tm, _round_up(rows8 // 2, 8))
    batch_pad = _round_up(batch, tm)
    if batch_pad != batch:
        x = jnp.pad(x, ((0, batch_pad - batch), (0, 0)))

    const2 = lambda i: (0, 0)          # weights/biases resident in VMEM
    const3 = lambda i: (0, 0, 0)
    weight_specs = [
        pl.BlockSpec(w1p.shape, const2),
        pl.BlockSpec(b1p.shape, const2),
        pl.BlockSpec(w234.shape, const3),
        pl.BlockSpec(b234.shape, const3),
        pl.BlockSpec(w5p.shape, const2),
        pl.BlockSpec(b5p.shape, const2),
    ]

    # Explicit VMEM budget: double-buffered x/out tiles + resident weights +
    # headroom for the f32 activation working set (matters on v5e's 16 MiB default).
    weights_bytes = sum(int(p.size) * p.dtype.itemsize for p in padded)
    io_bytes = 2 * tm * din_pad * 4 + 2 * tm * opad * 4
    act_bytes = tm * max(din_pad, HPAD, opad) * 4
    vmem_budget = int(1.5 * (2 * weights_bytes + io_bytes + 8 * act_bytes)) + (1 << 20)
    vmem_budget = min(max(vmem_budget, 16 << 20), 48 << 20)

    out = pl.pallas_call(
        gcn_kernel,
        out_shape=jax.ShapeDtypeStruct((batch_pad, opad), jnp.float32),
        grid=(batch_pad // tm,),
        in_specs=[pl.BlockSpec((tm, din_pad), lambda i: (i, 0))] + weight_specs,
        out_specs=pl.BlockSpec((tm, opad), lambda i: (i, 0)),
        compiler_params=pltpu.CompilerParams(
            dimension_semantics=("parallel",),
            vmem_limit_bytes=vmem_budget),
    )(x, *padded)
    # Drop batch padding and padded output columns (padded cols = sigmoid(0)=0.5,
    # never reused anywhere — just sliced away here).
    return out[:batch, :dim_out]


def init_params(key, dim_in, dim_out, hidden=HIDDEN):
    """PyTorch nn.Linear-style init (U[-1/sqrt(fan_in), 1/sqrt(fan_in)]).
    Weights stored transposed: [in_features, out_features]; biases [1, out]."""
    dims = [(dim_in, hidden), (hidden, hidden), (hidden, hidden),
            (hidden, hidden), (hidden, dim_out)]
    params = []
    for fan_in, fan_out in dims:
        key, kw, kb = jax.random.split(key, 3)
        bound = 1.0 / (fan_in ** 0.5)
        w = jax.random.uniform(kw, (fan_in, fan_out), jnp.float32, -bound, bound)
        b = jax.random.uniform(kb, (1, fan_out), jnp.float32, -bound, bound)
        params += [w, b]
    return tuple(params)


def gcn_reference(x, params):
    """Pure-JAX f32 reference on the logical (unpadded) parameters."""
    w1, b1, w2, b2, w3, b3, w4, b4, w5, b5 = params
    h = jnp.maximum(x @ w1 + b1, 0.0)
    h = jnp.maximum(h @ w2 + b2, 0.0)
    h = jnp.maximum(h @ w3 + b3, 0.0)
    h = jnp.maximum(h @ w4 + b4, 0.0)
    return jax.nn.sigmoid(h @ w5 + b5)


if __name__ == "__main__":
    key = jax.random.PRNGKey(0)
    batch, dim_in, dim_out = 8, 32, 4

    key, kx = jax.random.split(key)
    x = jax.random.normal(kx, (batch, dim_in), jnp.float32)
    params = init_params(key, dim_in, dim_out)

    out = gcn_forward(x, params, dim_out)
    out = jax.block_until_ready(out)

    ref = gcn_reference(x, params)
    assert out.shape == (batch, dim_out)
    # Kernel matmuls use bf16 operands with f32 accumulation (MXU peak path);
    # sigmoid outputs in (0,1) match the f32 reference well within 2e-2.
    assert jnp.allclose(out, ref, atol=2e-2, rtol=2e-2), "mismatch vs reference"

    print("KERNEL_OK")
</pallas_src>

<mosaic_0001>
module attributes {stable_mosaic.version = 11 : i64} {
  func.func @gcn_kernel(%arg0: i32, %arg1: memref<8x128xf32, #tpu.memory_space<vmem>>, %arg2: memref<128x128xbf16, #tpu.memory_space<vmem>>, %arg3: memref<1x128xf32, #tpu.memory_space<vmem>>, %arg4: memref<3x128x128xbf16, #tpu.memory_space<vmem>>, %arg5: memref<3x1x128xf32, #tpu.memory_space<vmem>>, %arg6: memref<128x128xbf16, #tpu.memory_space<vmem>>, %arg7: memref<1x128xf32, #tpu.memory_space<vmem>>, %arg8: memref<8x128xf32, #tpu.memory_space<vmem>>) attributes {dimension_semantics = [#tpu.dimension_semantics<parallel>], iteration_bounds = array<i64: 1>, scalar_prefetch = 0 : i64, scratch_operands = 0 : i64, tpu.core_type = #tpu.core_type<tc>, window_params = [{transform_indices = @transform_0, window_bounds = array<i64: 8, 128>}, {pipeline_mode = #tpu.pipeline_mode<synchronous>, transform_indices = @transform_1, window_bounds = array<i64: 128, 128>}, {pipeline_mode = #tpu.pipeline_mode<synchronous>, transform_indices = @transform_2, window_bounds = array<i64: 1, 128>}, {pipeline_mode = #tpu.pipeline_mode<synchronous>, transform_indices = @transform_3, window_bounds = array<i64: 3, 128, 128>}, {pipeline_mode = #tpu.pipeline_mode<synchronous>, transform_indices = @transform_4, window_bounds = array<i64: 3, 1, 128>}, {pipeline_mode = #tpu.pipeline_mode<synchronous>, transform_indices = @transform_5, window_bounds = array<i64: 128, 128>}, {pipeline_mode = #tpu.pipeline_mode<synchronous>, transform_indices = @transform_6, window_bounds = array<i64: 1, 128>}, {transform_indices = @transform_7, window_bounds = array<i64: 8, 128>}]} {
    %c0 = arith.constant 0 : index
    %c0_0 = arith.constant 0 : index
    %0 = vector.load %arg1[%c0, %c0_0] : memref<8x128xf32, #tpu.memory_space<vmem>>, vector<8x128xf32>
    %1 = arith.truncf %0 : vector<8x128xf32> to vector<8x128xbf16>
    %c0_1 = arith.constant 0 : index
    %c0_2 = arith.constant 0 : index
    %2 = vector.load %arg2[%c0_1, %c0_2] : memref<128x128xbf16, #tpu.memory_space<vmem>>, vector<128x128xbf16>
    %cst = arith.constant dense<0.000000e+00> : vector<8x128xf32>
    %3 = tpu.matmul %1, %2, %cst {dimension_numbers = #tpu.dot_dimension_numbers<[1], [0], [0], [1], [0, 0, 1, 1], [], []>} : vector<8x128xbf16>, vector<128x128xbf16>, vector<8x128xf32> -> vector<8x128xf32>
    %c0_3 = arith.constant 0 : index
    %c0_4 = arith.constant 0 : index
    %4 = vector.load %arg3[%c0_3, %c0_4] : memref<1x128xf32, #tpu.memory_space<vmem>>, vector<1x128xf32>
    %5 = vector.broadcast %4 : vector<1x128xf32> to vector<8x128xf32>
    %6 = arith.addf %3, %5 : vector<8x128xf32>
    %cst_5 = arith.constant 0.000000e+00 : f32
    %7 = vector.broadcast %cst_5 : f32 to vector<8x128xf32>
    %8 = arith.maximumf %6, %7 : vector<8x128xf32>
    %9 = arith.truncf %8 : vector<8x128xf32> to vector<8x128xbf16>
    %c0_6 = arith.constant 0 : index
    %c0_7 = arith.constant 0 : index
    %c0_8 = arith.constant 0 : index
    %10 = vector.load %arg4[%c0_6, %c0_7, %c0_8] : memref<3x128x128xbf16, #tpu.memory_space<vmem>>, vector<1x128x128xbf16>
    %11 = vector.shape_cast %10 : vector<1x128x128xbf16> to vector<128x128xbf16>
    %cst_9 = arith.constant dense<0.000000e+00> : vector<8x128xf32>
    %12 = tpu.matmul %9, %11, %cst_9 {dimension_numbers = #tpu.dot_dimension_numbers<[1], [0], [0], [1], [0, 0, 1, 1], [], []>} : vector<8x128xbf16>, vector<128x128xbf16>, vector<8x128xf32> -> vector<8x128xf32>
    %c0_10 = arith.constant 0 : index
    %c0_11 = arith.constant 0 : index
    %c0_12 = arith.constant 0 : index
    %13 = vector.load %arg5[%c0_10, %c0_11, %c0_12] : memref<3x1x128xf32, #tpu.memory_space<vmem>>, vector<1x1x128xf32>
    %14 = vector.shape_cast %13 : vector<1x1x128xf32> to vector<1x128xf32>
    %15 = vector.broadcast %14 : vector<1x128xf32> to vector<8x128xf32>
    %16 = arith.addf %12, %15 : vector<8x128xf32>
    %cst_13 = arith.constant 0.000000e+00 : f32
    %17 = vector.broadcast %cst_13 : f32 to vector<8x128xf32>
    %18 = arith.maximumf %16, %17 : vector<8x128xf32>
    %19 = arith.truncf %18 : vector<8x128xf32> to vector<8x128xbf16>
    %c1 = arith.constant 1 : index
    %c0_14 = arith.constant 0 : index
    %c0_15 = arith.constant 0 : index
    %20 = vector.load %arg4[%c1, %c0_14, %c0_15] : memref<3x128x128xbf16, #tpu.memory_space<vmem>>, vector<1x128x128xbf16>
    %21 = vector.shape_cast %20 : vector<1x128x128xbf16> to vector<128x128xbf16>
    %cst_16 = arith.constant dense<0.000000e+00> : vector<8x128xf32>
    %22 = tpu.matmul %19, %21, %cst_16 {dimension_numbers = #tpu.dot_dimension_numbers<[1], [0], [0], [1], [0, 0, 1, 1], [], []>} : vector<8x128xbf16>, vector<128x128xbf16>, vector<8x128xf32> -> vector<8x128xf32>
    %c1_17 = arith.constant 1 : index
    %c0_18 = arith.constant 0 : index
    %c0_19 = arith.constant 0 : index
    %23 = vector.load %arg5[%c1_17, %c0_18, %c0_19] : memref<3x1x128xf32, #tpu.memory_space<vmem>>, vector<1x1x128xf32>
    %24 = vector.shape_cast %23 : vector<1x1x128xf32> to vector<1x128xf32>
    %25 = vector.broadcast %24 : vector<1x128xf32> to vector<8x128xf32>
    %26 = arith.addf %22, %25 : vector<8x128xf32>
    %cst_20 = arith.constant 0.000000e+00 : f32
    %27 = vector.broadcast %cst_20 : f32 to vector<8x128xf32>
    %28 = arith.maximumf %26, %27 : vector<8x128xf32>
    %29 = arith.truncf %28 : vector<8x128xf32> to vector<8x128xbf16>
    %c2 = arith.constant 2 : index
    %c0_21 = arith.constant 0 : index
    %c0_22 = arith.constant 0 : index
    %30 = vector.load %arg4[%c2, %c0_21, %c0_22] : memref<3x128x128xbf16, #tpu.memory_space<vmem>>, vector<1x128x128xbf16>
    %31 = vector.shape_cast %30 : vector<1x128x128xbf16> to vector<128x128xbf16>
    %cst_23 = arith.constant dense<0.000000e+00> : vector<8x128xf32>
    %32 = tpu.matmul %29, %31, %cst_23 {dimension_numbers = #tpu.dot_dimension_numbers<[1], [0], [0], [1], [0, 0, 1, 1], [], []>} : vector<8x128xbf16>, vector<128x128xbf16>, vector<8x128xf32> -> vector<8x128xf32>
    %c2_24 = arith.constant 2 : index
    %c0_25 = arith.constant 0 : index
    %c0_26 = arith.constant 0 : index
    %33 = vector.load %arg5[%c2_24, %c0_25, %c0_26] : memref<3x1x128xf32, #tpu.memory_space<vmem>>, vector<1x1x128xf32>
    %34 = vector.shape_cast %33 : vector<1x1x128xf32> to vector<1x128xf32>
    %35 = vector.broadcast %34 : vector<1x128xf32> to vector<8x128xf32>
    %36 = arith.addf %32, %35 : vector<8x128xf32>
    %cst_27 = arith.constant 0.000000e+00 : f32
    %37 = vector.broadcast %cst_27 : f32 to vector<8x128xf32>
    %38 = arith.maximumf %36, %37 : vector<8x128xf32>
    %39 = arith.truncf %38 : vector<8x128xf32> to vector<8x128xbf16>
    %c0_28 = arith.constant 0 : index
    %c0_29 = arith.constant 0 : index
    %40 = vector.load %arg6[%c0_28, %c0_29] : memref<128x128xbf16, #tpu.memory_space<vmem>>, vector<128x128xbf16>
    %cst_30 = arith.constant dense<0.000000e+00> : vector<8x128xf32>
    %41 = tpu.matmul %39, %40, %cst_30 {dimension_numbers = #tpu.dot_dimension_numbers<[1], [0], [0], [1], [0, 0, 1, 1], [], []>} : vector<8x128xbf16>, vector<128x128xbf16>, vector<8x128xf32> -> vector<8x128xf32>
    %c0_31 = arith.constant 0 : index
    %c0_32 = arith.constant 0 : index
    %42 = vector.load %arg7[%c0_31, %c0_32] : memref<1x128xf32, #tpu.memory_space<vmem>>, vector<1x128xf32>
    %43 = vector.broadcast %42 : vector<1x128xf32> to vector<8x128xf32>
    %44 = arith.addf %41, %43 : vector<8x128xf32>
    %cst_33 = arith.constant 5.000000e-01 : f32
    %45 = vector.broadcast %cst_33 : f32 to vector<8x128xf32>
    %46 = arith.mulf %45, %44 : vector<8x128xf32>
    %47 = math.tanh %46 : vector<8x128xf32>
    %cst_34 = arith.constant 5.000000e-01 : f32
    %48 = vector.broadcast %cst_34 : f32 to vector<8x128xf32>
    %49 = arith.mulf %48, %47 : vector<8x128xf32>
    %cst_35 = arith.constant 5.000000e-01 : f32
    %50 = vector.broadcast %cst_35 : f32 to vector<8x128xf32>
    %51 = arith.addf %49, %50 : vector<8x128xf32>
    %c0_36 = arith.constant 0 : index
    %c0_37 = arith.constant 0 : index
    %52 = vector.load %arg8[%c0_36, %c0_37] : memref<8x128xf32, #tpu.memory_space<vmem>>, vector<8x128xf32>
    tpu.vector_store %arg8[%c0_36, %c0_37], %51 {strides = array<i32>} : memref<8x128xf32, #tpu.memory_space<vmem>>, vector<8x128xf32>,
    return
  }
  func.func @transform_0(%arg0: i32) -> (i32, i32) {
    %c0_i32 = arith.constant 0 : i32
    %c0_i32_0 = arith.constant 0 : i32
    return %arg0, %c0_i32 : i32, i32
  }
  func.func @transform_1(%arg0: i32) -> (i32, i32) {
    %c0_i32 = arith.constant 0 : i32
    %c0_i32_0 = arith.constant 0 : i32
    %c0_i32_1 = arith.constant 0 : i32
    return %c0_i32, %c0_i32_0 : i32, i32
  }
  func.func @transform_2(%arg0: i32) -> (i32, i32) {
    %c0_i32 = arith.constant 0 : i32
    %c0_i32_0 = arith.constant 0 : i32
    %c0_i32_1 = arith.constant 0 : i32
    return %c0_i32, %c0_i32_0 : i32, i32
  }
  func.func @transform_3(%arg0: i32) -> (i32, i32, i32) {
    %c0_i32 = arith.constant 0 : i32
    %c0_i32_0 = arith.constant 0 : i32
    %c0_i32_1 = arith.constant 0 : i32
    %c0_i32_2 = arith.constant 0 : i32
    return %c0_i32, %c0_i32_0, %c0_i32_1 : i32, i32, i32
  }
  func.func @transform_4(%arg0: i32) -> (i32, i32, i32) {
    %c0_i32 = arith.constant 0 : i32
    %c0_i32_0 = arith.constant 0 : i32
    %c0_i32_1 = arith.constant 0 : i32
    %c0_i32_2 = arith.constant 0 : i32
    return %c0_i32, %c0_i32_0, %c0_i32_1 : i32, i32, i32
  }
  func.func @transform_5(%arg0: i32) -> (i32, i32) {
    %c0_i32 = arith.constant 0 : i32
    %c0_i32_0 = arith.constant 0 : i32
    %c0_i32_1 = arith.constant 0 : i32
    return %c0_i32, %c0_i32_0 : i32, i32
  }
  func.func @transform_6(%arg0: i32) -> (i32, i32) {
    %c0_i32 = arith.constant 0 : i32
    %c0_i32_0 = arith.constant 0 : i32
    %c0_i32_1 = arith.constant 0 : i32
    return %c0_i32, %c0_i32_0 : i32, i32
  }
  func.func @transform_7(%arg0: i32) -> (i32, i32) {
    %c0_i32 = arith.constant 0 : i32
    %c0_i32_0 = arith.constant 0 : i32
    return %arg0, %c0_i32 : i32, i32
  }
}

</mosaic_0001>

<llo_original>
// kernel: tpu_custom_call.1
$region0: #{tpu_custom_call.1}
  #allocation0 [shape = 'u32[]', space=smem, size = 0x4, offset = 0x4, fixed_abs, tag = 'smem constant byte address 0x4 - core index']
  #allocation1 [shape = 'u32[144,128]{1,0:T(1,128)}', space=vmem, size = 0x12000, scoped, tag = 'internal scratch']
  %s0 = inlined_call_operand.hbm [shape: f32[8,128], index: 0, kind: input, shape index: {}]
  %s1 = inlined_call_operand.hbm [shape: bf16[128,128], index: 1, kind: input, shape index: {}]
  %s2 = inlined_call_operand.vmem [shape: f32[1,128], index: 2, kind: input, shape index: {}]
  %s3 = inlined_call_operand.hbm [shape: bf16[3,128,128], index: 3, kind: input, shape index: {}]
  %s4 = inlined_call_operand.vmem [shape: f32[3,1,128], index: 4, kind: input, shape index: {}]
  %s5 = inlined_call_operand.hbm [shape: bf16[128,128], index: 5, kind: input, shape index: {}]
  %s6 = inlined_call_operand.vmem [shape: f32[1,128], index: 6, kind: input, shape index: {}]
  %s7 = inlined_call_operand.hbm [shape: f32[8,128], index: 7, kind: output, shape index: {}]
  %s8 = sld [smem:[#allocation0]]
  $region54: #{tpu_custom_call.1} parent=0
    _
  %s10 = ssub.s32 1, %s8
  %s11 = scalar_select 0, %s10, %s8
  $region1: #{tpu_custom_call.1} parent=0
    #allocation2 [shape = 'u8[4096]{0}', space=vmem, size = 0x1000, scoped, tag = 'input window, operand 0, single buffered']
    #allocation3 [shape = 's32[1]{0}', space=sflag, size = 0x4, scoped, tag = 'scoped memory for tpu_custom_call.1']
    #allocation4 [shape = 's32[1]{0}', space=sflag, size = 0x4, scoped, tag = 'scoped memory for tpu_custom_call.1']
    #allocation5 [shape = 'u8[32768]{0}', space=vmem, size = 0x8000, scoped, tag = 'input window, operand 1, single buffered']
    #allocation6 [shape = 's32[1]{0}', space=sflag, size = 0x4, scoped, tag = 'scoped memory for tpu_custom_call.1']
    #allocation7 [shape = 'u8[98304]{0}', space=vmem, size = 0x18000, scoped, tag = 'input window, operand 3, single buffered']
    #allocation8 [shape = 'u8[32768]{0}', space=vmem, size = 0x8000, scoped, tag = 'input window, operand 5, single buffered']
    #allocation9 [shape = 's32[1]{0}', space=sflag, size = 0x4, scoped, tag = 'scoped memory for tpu_custom_call.1']
    #allocation10 [shape = 'u8[4096]{0}', space=vmem, size = 0x1000, scoped, tag = 'output window, operand 0, single buffered']
    %12 = vsyncpa [#allocation3], 0
    %13 = vsyncpa [#allocation6], 0
    %14 = vsyncpa [#allocation9], 0
    %15 = vsyncpa [#allocation4], 0
    // Predicated region
    $region2: #{tpu_custom_call.1} parent=1 // pred_check
      _
    $region3: #{tpu_custom_call.1} parent=1 // pred_check_branch
      %17 = sbr.rel (0) target = $region5
    $region4: #{tpu_custom_call.1} parent=1 // pred_region
      %s19 = ssub.s32 128, 128
      %20 = vsyncadd [#allocation3], %s19
      %s22 = sshll.u32 [#allocation2], 4
      %s23 = int_to_ptr.vmem [resolvable:$true] %s22
      %25 = dma.hbm_to_vmem [thread:$0]  %s0, 128, %s23, [#allocation3]
    $region5: #{tpu_custom_call.1} parent=1 // pred_fallthru
      _
    // Predicated region
    $region6: #{tpu_custom_call.1} parent=1 // pred_check
      _
    $region7: #{tpu_custom_call.1} parent=1 // pred_check_branch
      %27 = sbr.rel (0) target = $region9
    $region8: #{tpu_custom_call.1} parent=1 // pred_region
      %s29 = ssub.s32 1024, 1024
      %30 = vsyncadd [#allocation6], %s29
      %s31 = sshll.u32 [#allocation5], 4
      %s32 = int_to_ptr.vmem [resolvable:$true] %s31
      %37 = dma.hbm_to_vmem [thread:$0]  %s1, 1024, %s32, [#allocation6], 64, 64, 4
    $region9: #{tpu_custom_call.1} parent=1 // pred_fallthru
      _
    // Predicated region
    $region10: #{tpu_custom_call.1} parent=1 // pred_check
      _
    $region11: #{tpu_custom_call.1} parent=1 // pred_check_branch
      %39 = sbr.rel (0) target = $region13
    $region12: #{tpu_custom_call.1} parent=1 // pred_region
      _
    $region13: #{tpu_custom_call.1} parent=1 // pred_fallthru
      _
    // Predicated region
    $region14: #{tpu_custom_call.1} parent=1 // pred_check
      _
    $region15: #{tpu_custom_call.1} parent=1 // pred_check_branch
      %41 = sbr.rel (0) target = $region17
    $region16: #{tpu_custom_call.1} parent=1 // pred_region
      %s43 = ssub.s32 3072, 3072
      %44 = vsyncadd [#allocation6], %s43
      %s45 = sshll.u32 [#allocation7], 4
      %s46 = int_to_ptr.vmem [resolvable:$true] %s45
      %51 = dma.hbm_to_vmem [thread:$0]  %s3, 3072, %s46, [#allocation6], 64, 64, 4
    $region17: #{tpu_custom_call.1} parent=1 // pred_fallthru
      _
    // Predicated region
    $region18: #{tpu_custom_call.1} parent=1 // pred_check
      _
    $region19: #{tpu_custom_call.1} parent=1 // pred_check_branch
      %53 = sbr.rel (0) target = $region21
    $region20: #{tpu_custom_call.1} parent=1 // pred_region
      _
    $region21: #{tpu_custom_call.1} parent=1 // pred_fallthru
      _
    // Predicated region
    $region22: #{tpu_custom_call.1} parent=1 // pred_check
      _
    $region23: #{tpu_custom_call.1} parent=1 // pred_check_branch
      %55 = sbr.rel (0) target = $region25
    $region24: #{tpu_custom_call.1} parent=1 // pred_region
      %s57 = ssub.s32 1024, 1024
      %58 = vsyncadd [#allocation9], %s57
      %s59 = sshll.u32 [#allocation8], 4
      %s60 = int_to_ptr.vmem [resolvable:$true] %s59
      %65 = dma.hbm_to_vmem [thread:$0]  %s5, 1024, %s60, [#allocation9], 64, 64, 4
    $region25: #{tpu_custom_call.1} parent=1 // pred_fallthru
      _
    // Predicated region
    $region26: #{tpu_custom_call.1} parent=1 // pred_check
      _
    $region27: #{tpu_custom_call.1} parent=1 // pred_check_branch
      %67 = sbr.rel (0) target = $region29
    $region28: #{tpu_custom_call.1} parent=1 // pred_region
      _
    $region29: #{tpu_custom_call.1} parent=1 // pred_fallthru
      _
    // Predicated region
    $region30: #{tpu_custom_call.1} parent=1 // pred_check
      _
    $region31: #{tpu_custom_call.1} parent=1 // pred_check_branch
      %69 = sbr.rel (0) target = $region33
    $region32: #{tpu_custom_call.1} parent=1 // pred_region
      %70 = dma.done [#allocation3], 128
    $region33: #{tpu_custom_call.1} parent=1 // pred_fallthru
      _
    // Predicated region
    $region34: #{tpu_custom_call.1} parent=1 // pred_check
      _
    $region35: #{tpu_custom_call.1} parent=1 // pred_check_branch
      %72 = sbr.rel (0) target = $region37
    $region36: #{tpu_custom_call.1} parent=1 // pred_region
      %73 = dma.done [#allocation6], 1024
    $region37: #{tpu_custom_call.1} parent=1 // pred_fallthru
      _
    // Predicated region
    $region38: #{tpu_custom_call.1} parent=1 // pred_check
      _
    $region39: #{tpu_custom_call.1} parent=1 // pred_check_branch
      %75 = sbr.rel (0) target = $region41
    $region40: #{tpu_custom_call.1} parent=1 // pred_region
      %76 = dma.done [#allocation6], 3072
    $region41: #{tpu_custom_call.1} parent=1 // pred_fallthru
      _
    // Predicated region
    $region42: #{tpu_custom_call.1} parent=1 // pred_check
      _
    $region43: #{tpu_custom_call.1} parent=1 // pred_check_branch
      %78 = sbr.rel (0) target = $region45
    $region44: #{tpu_custom_call.1} parent=1 // pred_region
      %79 = dma.done [#allocation9], 1024
    $region45: #{tpu_custom_call.1} parent=1 // pred_fallthru
      _
    %v81 = vld [vmem:[#allocation2] sm:$0xff]
    %v82 = vpack.c.bf16 %v81, %v81
    %v83 = vld [vmem:[#allocation5] sm:$0xf]
    %v84 = vld [vmem:[#allocation5 + $0x4] sm:$0xf]
    %v85 = vld [vmem:[#allocation5 + $0x8] sm:$0xf]
    %v86 = vld [vmem:[#allocation5 + $0xc] sm:$0xf]
    %v87 = vld [vmem:[#allocation5 + $0x10] sm:$0xf]
    %v88 = vld [vmem:[#allocation5 + $0x14] sm:$0xf]
    %v89 = vld [vmem:[#allocation5 + $0x18] sm:$0xf]
    %v90 = vld [vmem:[#allocation5 + $0x1c] sm:$0xf]
    %v91 = vld [vmem:[#allocation5 + $0x20] sm:$0xf]
    %v92 = vld [vmem:[#allocation5 + $0x24] sm:$0xf]
    %v93 = vld [vmem:[#allocation5 + $0x28] sm:$0xf]
    %v94 = vld [vmem:[#allocation5 + $0x2c] sm:$0xf]
    %v95 = vld [vmem:[#allocation5 + $0x30] sm:$0xf]
    %v96 = vld [vmem:[#allocation5 + $0x34] sm:$0xf]
    %v97 = vld [vmem:[#allocation5 + $0x38] sm:$0xf]
    %v98 = vld [vmem:[#allocation5 + $0x3c] sm:$0xf]
    %v99 = vld [vmem:[%s2] sm:$0x1]
    %v101 = vlaneseq
    %v102 = vshrl.u32 %v101, 7
    %v103 = vsub.s32 0, %v102
    %v104 = vrot.slane %v99, %v103
    %v122 = vunpack.c.l.b16 %v83
    %v123 = vunpack.c.l.b16 %v84
    %v124 = vunpack.c.l.b16 %v85
    %v125 = vunpack.c.l.b16 %v86
    %v126 = vunpack.c.l.b16 %v87
    %v127 = vunpack.c.l.b16 %v88
    %v128 = vunpack.c.l.b16 %v89
    %v129 = vunpack.c.l.b16 %v90
    %v130 = vunpack.c.l.b16 %v91
    %v131 = vunpack.c.l.b16 %v92
    %v132 = vunpack.c.l.b16 %v93
    %v133 = vunpack.c.l.b16 %v94
    %v134 = vunpack.c.l.b16 %v95
    %v135 = vunpack.c.l.b16 %v96
    %v136 = vunpack.c.l.b16 %v97
    %v137 = vunpack.c.l.b16 %v98
    %v138 = vpack.c.b16 %v123, %v122
    %v139 = vpack.c.b16 %v125, %v124
    %v140 = vpack.c.b16 %v127, %v126
    %v141 = vpack.c.b16 %v129, %v128
    %v142 = vpack.c.b16 %v131, %v130
    %v143 = vpack.c.b16 %v133, %v132
    %v144 = vpack.c.b16 %v135, %v134
    %v145 = vpack.c.b16 %v137, %v136
    %154 = vmatprep.subr.bf16.mxu0 0
    %155 = vmatpush1.bf16.msra.mxu0 %v145
    %156 = vmatprep.subr.bf16.mxu0 0
    %157 = vmatpush1.bf16.msra.mxu0 %v144
    %158 = vmatprep.subr.bf16.mxu0 0
    %159 = vmatpush1.bf16.msra.mxu0 %v143
    %160 = vmatprep.subr.bf16.mxu0 0
    %161 = vmatpush1.bf16.msra.mxu0 %v142
    %162 = vmatprep.subr.bf16.mxu0 0
    %163 = vmatpush1.bf16.msra.mxu0 %v141
    %164 = vmatprep.subr.bf16.mxu0 0
    %165 = vmatpush1.bf16.msra.mxu0 %v140
    %166 = vmatprep.subr.bf16.mxu0 0
    %167 = vmatpush1.bf16.msra.mxu0 %v139
    %168 = vmatprep.subr.bf16.mxu0 0
    %169 = vmatpush1.bf16.msra.mxu0 %v138
    %170 = vmatprep.subr.bf16.mxu0 0
    %171 = vmatpush2.bf16.msra.mxu0 0
    %172 = vmatprep.subr.bf16.mxu0 0
    %173 = vmatpush2.bf16.msra.mxu0 0
    %174 = vmatprep.subr.bf16.mxu0 0
    %175 = vmatpush2.bf16.msra.mxu0 0
    %176 = vmatprep.subr.bf16.mxu0 0
    %177 = vmatpush2.bf16.msra.mxu0 0
    %178 = vmatprep.subr.bf16.mxu0 0
    %179 = vmatpush2.bf16.msra.mxu0 0
    %180 = vmatprep.subr.bf16.mxu0 0
    %181 = vmatpush2.bf16.msra.mxu0 0
    %182 = vmatprep.subr.bf16.mxu0 0
    %183 = vmatpush2.bf16.msra.mxu0 0
    %184 = vmatprep.subr.bf16.mxu0 0
    %185 = vmatpush2.bf16.msra.mxu0 0
    %186 = vmatprep.mubr.bf16.mxu0 0
    %187 = vmatmul.mubr.bf16.gmra.mxu0 %v82
    %v188 = vpop.f32.mrf.mxu0
    %v189 = vadd.f32 %v104, %v188
    %v190 = vpop.f32.mrf.mxu0
    %v191 = vpop.f32.mrf.mxu0
    %v192 = vpop.f32.mrf.mxu0
    %193 = vdwg.mxu0
    %v194 = vmax.f32 %v189, 0.0
    %v195 = vpack.c.bf16 %v194, %v194
    %v196 = vld [vmem:[#allocation7] sm:$0xf]
    %v197 = vld [vmem:[#allocation7 + $0x4] sm:$0xf]
    %v198 = vld [vmem:[#allocation7 + $0x8] sm:$0xf]
    %v199 = vld [vmem:[#allocation7 + $0xc] sm:$0xf]
    %v200 = vld [vmem:[#allocation7 + $0x10] sm:$0xf]
    %v201 = vld [vmem:[#allocation7 + $0x14] sm:$0xf]
    %v202 = vld [vmem:[#allocation7 + $0x18] sm:$0xf]
    %v203 = vld [vmem:[#allocation7 + $0x1c] sm:$0xf]
    %v204 = vld [vmem:[#allocation7 + $0x20] sm:$0xf]
    %v205 = vld [vmem:[#allocation7 + $0x24] sm:$0xf]
    %v206 = vld [vmem:[#allocation7 + $0x28] sm:$0xf]
    %v207 = vld [vmem:[#allocation7 + $0x2c] sm:$0xf]
    %v208 = vld [vmem:[#allocation7 + $0x30] sm:$0xf]
    %v209 = vld [vmem:[#allocation7 + $0x34] sm:$0xf]
    %v210 = vld [vmem:[#allocation7 + $0x38] sm:$0xf]
    %v211 = vld [vmem:[#allocation7 + $0x3c] sm:$0xf]
    %v212 = vld [vmem:[%s4] sm:$0x1]
    %v214 = vlaneseq
    %v215 = vshrl.u32 %v214, 7
    %v216 = vsub.s32 0, %v215
    %v217 = vrot.slane %v212, %v216
    %v235 = vunpack.c.l.b16 %v196
    %v236 = vunpack.c.l.b16 %v197
    %v237 = vunpack.c.l.b16 %v198
    %v238 = vunpack.c.l.b16 %v199
    %v239 = vunpack.c.l.b16 %v200
    %v240 = vunpack.c.l.b16 %v201
    %v241 = vunpack.c.l.b16 %v202
    %v242 = vunpack.c.l.b16 %v203
    %v243 = vunpack.c.l.b16 %v204
    %v244 = vunpack.c.l.b16 %v205
    %v245 = vunpack.c.l.b16 %v206
    %v246 = vunpack.c.l.b16 %v207
    %v247 = vunpack.c.l.b16 %v208
    %v248 = vunpack.c.l.b16 %v209
    %v249 = vunpack.c.l.b16 %v210
    %v250 = vunpack.c.l.b16 %v211
    %v251 = vpack.c.b16 %v236, %v235
    %v252 = vpack.c.b16 %v238, %v237
    %v253 = vpack.c.b16 %v240, %v239
    %v254 = vpack.c.b16 %v242, %v241
    %v255 = vpack.c.b16 %v244, %v243
    %v256 = vpack.c.b16 %v246, %v245
    %v257 = vpack.c.b16 %v248, %v247
    %v258 = vpack.c.b16 %v250, %v249
    %267 = vmatprep.subr.bf16.mxu0 0
    %268 = vmatpush1.bf16.msra.mxu0 %v258
    %269 = vmatprep.subr.bf16.mxu0 0
    %270 = vmatpush1.bf16.msra.mxu0 %v257
    %271 = vmatprep.subr.bf16.mxu0 0
    %272 = vmatpush1.bf16.msra.mxu0 %v256
    %273 = vmatprep.subr.bf16.mxu0 0
    %274 = vmatpush1.bf16.msra.mxu0 %v255
    %275 = vmatprep.subr.bf16.mxu0 0
    %276 = vmatpush1.bf16.msra.mxu0 %v254
    %277 = vmatprep.subr.bf16.mxu0 0
    %278 = vmatpush1.bf16.msra.mxu0 %v253
    %279 = vmatprep.subr.bf16.mxu0 0
    %280 = vmatpush1.bf16.msra.mxu0 %v252
    %281 = vmatprep.subr.bf16.mxu0 0
    %282 = vmatpush1.bf16.msra.mxu0 %v251
    %283 = vmatprep.subr.bf16.mxu0 0
    %284 = vmatpush2.bf16.msra.mxu0 0
    %285 = vmatprep.subr.bf16.mxu0 0
    %286 = vmatpush2.bf16.msra.mxu0 0
    %287 = vmatprep.subr.bf16.mxu0 0
    %288 = vmatpush2.bf16.msra.mxu0 0
    %289 = vmatprep.subr.bf16.mxu0 0
    %290 = vmatpush2.bf16.msra.mxu0 0
    %291 = vmatprep.subr.bf16.mxu0 0
    %292 = vmatpush2.bf16.msra.mxu0 0
    %293 = vmatprep.subr.bf16.mxu0 0
    %294 = vmatpush2.bf16.msra.mxu0 0
    %295 = vmatprep.subr.bf16.mxu0 0
    %296 = vmatpush2.bf16.msra.mxu0 0
    %297 = vmatprep.subr.bf16.mxu0 0
    %298 = vmatpush2.bf16.msra.mxu0 0
    %299 = vmatprep.mubr.bf16.mxu0 0
    %300 = vmatmul.mubr.bf16.gmra.mxu0 %v195
    %v301 = vpop.f32.mrf.mxu0
    %v302 = vadd.f32 %v217, %v301
    %v303 = vpop.f32.mrf.mxu0
    %v304 = vpop.f32.mrf.mxu0
    %v305 = vpop.f32.mrf.mxu0
    %306 = vdwg.mxu0
    %v307 = vmax.f32 %v302, 0.0
    %v308 = vpack.c.bf16 %v307, %v307
    %s309 = scalar_lea.vmem [#allocation7], 64
    %v310 = vld [vmem:[%s309] sm:$0xf]
    %v311 = vld [vmem:[%s309 + $0x4] sm:$0xf]
    %v312 = vld [vmem:[%s309 + $0x8] sm:$0xf]
    %v313 = vld [vmem:[%s309 + $0xc] sm:$0xf]
    %v314 = vld [vmem:[%s309 + $0x10] sm:$0xf]
    %v315 = vld [vmem:[%s309 + $0x14] sm:$0xf]
    %v316 = vld [vmem:[%s309 + $0x18] sm:$0xf]
    %v317 = vld [vmem:[%s309 + $0x1c] sm:$0xf]
    %v318 = vld [vmem:[%s309 + $0x20] sm:$0xf]
    %v319 = vld [vmem:[%s309 + $0x24] sm:$0xf]
    %v320 = vld [vmem:[%s309 + $0x28] sm:$0xf]
    %v321 = vld [vmem:[%s309 + $0x2c] sm:$0xf]
    %v322 = vld [vmem:[%s309 + $0x30] sm:$0xf]
    %v323 = vld [vmem:[%s309 + $0x34] sm:$0xf]
    %v324 = vld [vmem:[%s309 + $0x38] sm:$0xf]
    %v325 = vld [vmem:[%s309 + $0x3c] sm:$0xf]
    %s326 = scalar_lea.vmem %s4, 1
    %v327 = vld [vmem:[%s326] sm:$0x1]
    %v329 = vlaneseq
    %v330 = vshrl.u32 %v329, 7
    %v331 = vsub.s32 0, %v330
    %v332 = vrot.slane %v327, %v331
    %v350 = vunpack.c.l.b16 %v310
    %v351 = vunpack.c.l.b16 %v311
    %v352 = vunpack.c.l.b16 %v312
    %v353 = vunpack.c.l.b16 %v313
    %v354 = vunpack.c.l.b16 %v314
    %v355 = vunpack.c.l.b16 %v315
    %v356 = vunpack.c.l.b16 %v316
    %v357 = vunpack.c.l.b16 %v317
    %v358 = vunpack.c.l.b16 %v318
    %v359 = vunpack.c.l.b16 %v319
    %v360 = vunpack.c.l.b16 %v320
    %v361 = vunpack.c.l.b16 %v321
    %v362 = vunpack.c.l.b16 %v322
    %v363 = vunpack.c.l.b16 %v323
    %v364 = vunpack.c.l.b16 %v324
    %v365 = vunpack.c.l.b16 %v325
    %v366 = vpack.c.b16 %v351, %v350
    %v367 = vpack.c.b16 %v353, %v352
    %v368 = vpack.c.b16 %v355, %v354
    %v369 = vpack.c.b16 %v357, %v356
    %v370 = vpack.c.b16 %v359, %v358
    %v371 = vpack.c.b16 %v361, %v360
    %v372 = vpack.c.b16 %v363, %v362
    %v373 = vpack.c.b16 %v365, %v364
    %382 = vmatprep.subr.bf16.mxu0 0
    %383 = vmatpush1.bf16.msra.mxu0 %v373
    %384 = vmatprep.subr.bf16.mxu0 0
    %385 = vmatpush1.bf16.msra.mxu0 %v372
    %386 = vmatprep.subr.bf16.mxu0 0
    %387 = vmatpush1.bf16.msra.mxu0 %v371
    %388 = vmatprep.subr.bf16.mxu0 0
    %389 = vmatpush1.bf16.msra.mxu0 %v370
    %390 = vmatprep.subr.bf16.mxu0 0
    %391 = vmatpush1.bf16.msra.mxu0 %v369
    %392 = vmatprep.subr.bf16.mxu0 0
    %393 = vmatpush1.bf16.msra.mxu0 %v368
    %394 = vmatprep.subr.bf16.mxu0 0
    %395 = vmatpush1.bf16.msra.mxu0 %v367
    %396 = vmatprep.subr.bf16.mxu0 0
    %397 = vmatpush1.bf16.msra.mxu0 %v366
    %398 = vmatprep.subr.bf16.mxu0 0
    %399 = vmatpush2.bf16.msra.mxu0 0
    %400 = vmatprep.subr.bf16.mxu0 0
    %401 = vmatpush2.bf16.msra.mxu0 0
    %402 = vmatprep.subr.bf16.mxu0 0
    %403 = vmatpush2.bf16.msra.mxu0 0
    %404 = vmatprep.subr.bf16.mxu0 0
    %405 = vmatpush2.bf16.msra.mxu0 0
    %406 = vmatprep.subr.bf16.mxu0 0
    %407 = vmatpush2.bf16.msra.mxu0 0
    %408 = vmatprep.subr.bf16.mxu0 0
    %409 = vmatpush2.bf16.msra.mxu0 0
    %410 = vmatprep.subr.bf16.mxu0 0
    %411 = vmatpush2.bf16.msra.mxu0 0
    %412 = vmatprep.subr.bf16.mxu0 0
    %413 = vmatpush2.bf16.msra.mxu0 0
    %414 = vmatprep.mubr.bf16.mxu0 0
    %415 = vmatmul.mubr.bf16.gmra.mxu0 %v308
    %v416 = vpop.f32.mrf.mxu0
    %v417 = vadd.f32 %v332, %v416
    %v418 = vpop.f32.mrf.mxu0
    %v419 = vpop.f32.mrf.mxu0
    %v420 = vpop.f32.mrf.mxu0
    %421 = vdwg.mxu0
    %v422 = vmax.f32 %v417, 0.0
    %v423 = vpack.c.bf16 %v422, %v422
    %s424 = scalar_lea.vmem [#allocation7], 128
    %v425 = vld [vmem:[%s424] sm:$0xf]
    %v426 = vld [vmem:[%s424 + $0x4] sm:$0xf]
    %v427 = vld [vmem:[%s424 + $0x8] sm:$0xf]
    %v428 = vld [vmem:[%s424 + $0xc] sm:$0xf]
    %v429 = vld [vmem:[%s424 + $0x10] sm:$0xf]
    %v430 = vld [vmem:[%s424 + $0x14] sm:$0xf]
    %v431 = vld [vmem:[%s424 + $0x18] sm:$0xf]
    %v432 = vld [vmem:[%s424 + $0x1c] sm:$0xf]
    %v433 = vld [vmem:[%s424 + $0x20] sm:$0xf]
    %v434 = vld [vmem:[%s424 + $0x24] sm:$0xf]
    %v435 = vld [vmem:[%s424 + $0x28] sm:$0xf]
    %v436 = vld [vmem:[%s424 + $0x2c] sm:$0xf]
    %v437 = vld [vmem:[%s424 + $0x30] sm:$0xf]
    %v438 = vld [vmem:[%s424 + $0x34] sm:$0xf]
    %v439 = vld [vmem:[%s424 + $0x38] sm:$0xf]
    %v440 = vld [vmem:[%s424 + $0x3c] sm:$0xf]
    %s441 = scalar_lea.vmem %s4, 2
    %v442 = vld [vmem:[%s441] sm:$0x1]
    %v444 = vlaneseq
    %v445 = vshrl.u32 %v444, 7
    %v446 = vsub.s32 0, %v445
    %v447 = vrot.slane %v442, %v446
    %v465 = vunpack.c.l.b16 %v425
    %v466 = vunpack.c.l.b16 %v426
    %v467 = vunpack.c.l.b16 %v427
    %v468 = vunpack.c.l.b16 %v428
    %v469 = vunpack.c.l.b16 %v429
    %v470 = vunpack.c.l.b16 %v430
    %v471 = vunpack.c.l.b16 %v431
    %v472 = vunpack.c.l.b16 %v432
    %v473 = vunpack.c.l.b16 %v433
    %v474 = vunpack.c.l.b16 %v434
    %v475 = vunpack.c.l.b16 %v435
    %v476 = vunpack.c.l.b16 %v436
    %v477 = vunpack.c.l.b16 %v437
    %v478 = vunpack.c.l.b16 %v438
    %v479 = vunpack.c.l.b16 %v439
    %v480 = vunpack.c.l.b16 %v440
    %v481 = vpack.c.b16 %v466, %v465
    %v482 = vpack.c.b16 %v468, %v467
    %v483 = vpack.c.b16 %v470, %v469
    %v484 = vpack.c.b16 %v472, %v471
    %v485 = vpack.c.b16 %v474, %v473
    %v486 = vpack.c.b16 %v476, %v475
    %v487 = vpack.c.b16 %v478, %v477
    %v488 = vpack.c.b16 %v480, %v479
    %497 = vmatprep.subr.bf16.mxu0 0
    %498 = vmatpush1.bf16.msra.mxu0 %v488
    %499 = vmatprep.subr.bf16.mxu0 0
    %500 = vmatpush1.bf16.msra.mxu0 %v487
    %501 = vmatprep.subr.bf16.mxu0 0
    %502 = vmatpush1.bf16.msra.mxu0 %v486
    %503 = vmatprep.subr.bf16.mxu0 0
    %504 = vmatpush1.bf16.msra.mxu0 %v485
    %505 = vmatprep.subr.bf16.mxu0 0
    %506 = vmatpush1.bf16.msra.mxu0 %v484
    %507 = vmatprep.subr.bf16.mxu0 0
    %508 = vmatpush1.bf16.msra.mxu0 %v483
    %509 = vmatprep.subr.bf16.mxu0 0
    %510 = vmatpush1.bf16.msra.mxu0 %v482
    %511 = vmatprep.subr.bf16.mxu0 0
    %512 = vmatpush1.bf16.msra.mxu0 %v481
    %513 = vmatprep.subr.bf16.mxu0 0
    %514 = vmatpush2.bf16.msra.mxu0 0
    %515 = vmatprep.subr.bf16.mxu0 0
    %516 = vmatpush2.bf16.msra.mxu0 0
    %517 = vmatprep.subr.bf16.mxu0 0
    %518 = vmatpush2.bf16.msra.mxu0 0
    %519 = vmatprep.subr.bf16.mxu0 0
    %520 = vmatpush2.bf16.msra.mxu0 0
    %521 = vmatprep.subr.bf16.mxu0 0
    %522 = vmatpush2.bf16.msra.mxu0 0
    %523 = vmatprep.subr.bf16.mxu0 0
    %524 = vmatpush2.bf16.msra.mxu0 0
    %525 = vmatprep.subr.bf16.mxu0 0
    %526 = vmatpush2.bf16.msra.mxu0 0
    %527 = vmatprep.subr.bf16.mxu0 0
    %528 = vmatpush2.bf16.msra.mxu0 0
    %529 = vmatprep.mubr.bf16.mxu0 0
    %530 = vmatmul.mubr.bf16.gmra.mxu0 %v423
    %v531 = vpop.f32.mrf.mxu0
    %v532 = vadd.f32 %v447, %v531
    %v533 = vpop.f32.mrf.mxu0
    %v534 = vpop.f32.mrf.mxu0
    %v535 = vpop.f32.mrf.mxu0
    %536 = vdwg.mxu0
    %v537 = vmax.f32 %v532, 0.0
    %v538 = vpack.c.bf16 %v537, %v537
    %v539 = vld [vmem:[#allocation8] sm:$0xf]
    %v540 = vld [vmem:[#allocation8 + $0x4] sm:$0xf]
    %v541 = vld [vmem:[#allocation8 + $0x8] sm:$0xf]
    %v542 = vld [vmem:[#allocation8 + $0xc] sm:$0xf]
    %v543 = vld [vmem:[#allocation8 + $0x10] sm:$0xf]
    %v544 = vld [vmem:[#allocation8 + $0x14] sm:$0xf]
    %v545 = vld [vmem:[#allocation8 + $0x18] sm:$0xf]
    %v546 = vld [vmem:[#allocation8 + $0x1c] sm:$0xf]
    %v547 = vld [vmem:[#allocation8 + $0x20] sm:$0xf]
    %v548 = vld [vmem:[#allocation8 + $0x24] sm:$0xf]
    %v549 = vld [vmem:[#allocation8 + $0x28] sm:$0xf]
    %v550 = vld [vmem:[#allocation8 + $0x2c] sm:$0xf]
    %v551 = vld [vmem:[#allocation8 + $0x30] sm:$0xf]
    %v552 = vld [vmem:[#allocation8 + $0x34] sm:$0xf]
    %v553 = vld [vmem:[#allocation8 + $0x38] sm:$0xf]
    %v554 = vld [vmem:[#allocation8 + $0x3c] sm:$0xf]
    %v555 = vld [vmem:[%s6] sm:$0x1]
    %v557 = vlaneseq
    %v558 = vshrl.u32 %v557, 7
    %v559 = vsub.s32 0, %v558
    %v560 = vrot.slane %v555, %v559
    %v578 = vunpack.c.l.b16 %v539
    %v579 = vunpack.c.l.b16 %v540
    %v580 = vunpack.c.l.b16 %v541
    %v581 = vunpack.c.l.b16 %v542
    %v582 = vunpack.c.l.b16 %v543
    %v583 = vunpack.c.l.b16 %v544
    %v584 = vunpack.c.l.b16 %v545
    %v585 = vunpack.c.l.b16 %v546
    %v586 = vunpack.c.l.b16 %v547
    %v587 = vunpack.c.l.b16 %v548
    %v588 = vunpack.c.l.b16 %v549
    %v589 = vunpack.c.l.b16 %v550
    %v590 = vunpack.c.l.b16 %v551
    %v591 = vunpack.c.l.b16 %v552
    %v592 = vunpack.c.l.b16 %v553
    %v593 = vunpack.c.l.b16 %v554
    %v594 = vpack.c.b16 %v579, %v578
    %v595 = vpack.c.b16 %v581, %v580
    %v596 = vpack.c.b16 %v583, %v582
    %v597 = vpack.c.b16 %v585, %v584
    %v598 = vpack.c.b16 %v587, %v586
    %v599 = vpack.c.b16 %v589, %v588
    %v600 = vpack.c.b16 %v591, %v590
    %v601 = vpack.c.b16 %v593, %v592
    %610 = vmatprep.subr.bf16.mxu0 0
    %611 = vmatpush1.bf16.msra.mxu0 %v601
    %612 = vmatprep.subr.bf16.mxu0 0
    %613 = vmatpush1.bf16.msra.mxu0 %v600
    %614 = vmatprep.subr.bf16.mxu0 0
    %615 = vmatpush1.bf16.msra.mxu0 %v599
    %616 = vmatprep.subr.bf16.mxu0 0
    %617 = vmatpush1.bf16.msra.mxu0 %v598
    %618 = vmatprep.subr.bf16.mxu0 0
    %619 = vmatpush1.bf16.msra.mxu0 %v597
    %620 = vmatprep.subr.bf16.mxu0 0
    %621 = vmatpush1.bf16.msra.mxu0 %v596
    %622 = vmatprep.subr.bf16.mxu0 0
    %623 = vmatpush1.bf16.msra.mxu0 %v595
    %624 = vmatprep.subr.bf16.mxu0 0
    %625 = vmatpush1.bf16.msra.mxu0 %v594
    %626 = vmatprep.subr.bf16.mxu0 0
    %627 = vmatpush2.bf16.msra.mxu0 0
    %628 = vmatprep.subr.bf16.mxu0 0
    %629 = vmatpush2.bf16.msra.mxu0 0
    %630 = vmatprep.subr.bf16.mxu0 0
    %631 = vmatpush2.bf16.msra.mxu0 0
    %632 = vmatprep.subr.bf16.mxu0 0
    %633 = vmatpush2.bf16.msra.mxu0 0
    %634 = vmatprep.subr.bf16.mxu0 0
    %635 = vmatpush2.bf16.msra.mxu0 0
    %636 = vmatprep.subr.bf16.mxu0 0
    %637 = vmatpush2.bf16.msra.mxu0 0
    %638 = vmatprep.subr.bf16.mxu0 0
    %639 = vmatpush2.bf16.msra.mxu0 0
    %640 = vmatprep.subr.bf16.mxu0 0
    %641 = vmatpush2.bf16.msra.mxu0 0
    %642 = vmatprep.mubr.bf16.mxu0 0
    %643 = vmatmul.mubr.bf16.gmra.mxu0 %v538
    %v644 = vpop.f32.mrf.mxu0
    %v645 = vadd.f32 %v560, %v644
    %v646 = vpop.f32.mrf.mxu0
    %v647 = vpop.f32.mrf.mxu0
    %v648 = vpop.f32.mrf.mxu0
    %649 = vdwg.mxu0
    %v650 = vmul.f32 %v645, 0.5
    %v651 = vtanh.pop %v650
    %v652 = vmul.f32 %v651, 0.5
    %v653 = vadd.f32 %v652, 0.5
    %654 = vst [vmem:[#allocation10] sm:$0xff] %v653
    // Predicated region
    $region46: #{tpu_custom_call.1} parent=1 // pred_check
      _
    $region47: #{tpu_custom_call.1} parent=1 // pred_check_branch
      %656 = sbr.rel (0) target = $region49
    $region48: #{tpu_custom_call.1} parent=1 // pred_region
      %s658 = ssub.s32 128, 128
      %659 = vsyncadd [#allocation4], %s658
      %s661 = sshll.u32 [#allocation10], 4
      %s662 = int_to_ptr.vmem [resolvable:$true] %s661
      %664 = dma.vmem_to_hbm [thread:$0]  %s662, 128, %s7, [#allocation4]
    $region49: #{tpu_custom_call.1} parent=1 // pred_fallthru
      _
    // Predicated region
    $region50: #{tpu_custom_call.1} parent=1 // pred_check
      _
    $region51: #{tpu_custom_call.1} parent=1 // pred_check_branch
      %666 = sbr.rel (0) target = $region53
    $region52: #{tpu_custom_call.1} parent=1 // pred_region
      %667 = dma.done [#allocation4], 128
    $region53: #{tpu_custom_call.1} parent=1 // pred_fallthru
      _
    %668 = vsyncpa [#allocation3], 1
    %669 = vsyncpa [#allocation6], 1
    %670 = vsyncpa [#allocation9], 1
    %671 = vsyncpa [#allocation4], 1

</llo_original>
